<compile_context>
chip_gen: v5e
topology: v5e:2x2
jax: 0.10.0
libtpu: 0.0.40
codegen_flags: <defaults>
</compile_context>

<pallas_src>
import functools

import jax
import jax.numpy as jnp
from jax.experimental import pallas as pl
from jax.experimental.pallas import tpu as pltpu

EPS = 1e-5


def conv_stats_kernel(w_ref, p_ref, y_ref, stats_ref):
    """Pass 1: conv tile matmul + per-channel sum / sum-of-squares partials.

    w_ref    : (Cout, K)       bf16  conv weight (reshaped)
    p_ref    : (K, TM)         bf16  im2col patch tile (transposed, lane-dense)
    y_ref    : (Cout, TM)      f32   pre-BN conv output tile
    stats_ref: (1, Cout, 128)  f32   lane 0 = sum, lane 1 = sum of squares
    """
    y = jnp.dot(w_ref[...], p_ref[...], preferred_element_type=jnp.float32)
    y_ref[...] = y
    s1 = jnp.sum(y, axis=1, keepdims=True)        # (Cout, 1)
    s2 = jnp.sum(y * y, axis=1, keepdims=True)    # (Cout, 1)
    lane = jax.lax.broadcasted_iota(jnp.int32, (y.shape[0], 128), 1)
    stats_ref[0] = jnp.where(lane == 0, s1, jnp.where(lane == 1, s2, 0.0))


def bn_prelu_kernel(y_ref, scale_ref, shift_ref, alpha_ref, o_ref):
    """Pass 2: y * scale + shift, then PReLU; in place via io aliasing.

    y_ref    : (Cout, TM) f32
    scale_ref: (Cout, 1)  f32  gamma * rsqrt(var + eps)
    shift_ref: (Cout, 1)  f32  beta - mean * scale
    alpha_ref: (1,)       f32  (SMEM) shared PReLU slope
    """
    z = y_ref[...] * scale_ref[...] + shift_ref[...]
    a = alpha_ref[0]
    o_ref[...] = jnp.where(z >= 0.0, z, a * z)


def _im2col_t(x_bf16, kh, kw, sh, sw, ph, pw):
    """NCHW bf16 -> (K, M) = (Cin*KH*KW, N*Hout*Wout) patch matrix (bf16).

    Pure XLA data movement (glue). K ordering matches
    conv_w.reshape(Cout, Cin*KH*KW): (ci, kh, kw) with kw fastest.
    """
    n, c, h, w = x_bf16.shape
    hout = (h + 2 * ph - kh) // sh + 1
    wout = (w + 2 * pw - kw) // sw + 1
    xp = jnp.pad(x_bf16, ((0, 0), (0, 0), (ph, ph), (pw, pw)))
    slabs = []
    for i in range(kh):
        for j in range(kw):
            slabs.append(
                xp[:, :, i:i + (hout - 1) * sh + 1:sh,
                      j:j + (wout - 1) * sw + 1:sw])      # (N, Cin, Hout, Wout)
    cols = jnp.stack(slabs, axis=0)                        # (KH*KW, N, Cin, Ho, Wo)
    cols = cols.transpose(2, 0, 1, 3, 4)                   # (Cin, KH*KW, N, Ho, Wo)
    return cols.reshape(c * kh * kw, n * hout * wout), hout, wout


def cnn_block_forward(x, conv_w, conv_b, bn_gamma, bn_beta, prelu_a,
                      stride=(1, 2), padding=(0, 2), block_m=512):
    """x: (N, Cin, H, W) f32; conv_w: (Cout, Cin, KH, KW). Returns NCHW f32."""
    del conv_b  # cancelled exactly by the training-mode BN mean subtraction
    n, cin, h, w = x.shape
    cout, _, kh, kw = conv_w.shape
    sh, sw = stride
    ph, pw = padding

    # --- glue: bf16 transposed im2col (K, M) ---------------------------------
    # NOTE: patch construction stays in XLA (bf16 halves its HBM cost). Pulling
    # it into the kernel as KH*KW strided-tap matmuls only pays off once the
    # spatial extent is wide enough (Wout >= 128) to give lane-dense taps.
    x_bf = x.astype(jnp.bfloat16)
    patches, hout, wout = _im2col_t(x_bf, kh, kw, sh, sw, ph, pw)   # (K, M)
    k_dim, m = patches.shape

    block_m = max(128, min(block_m, pl.next_power_of_2(m)))
    n_tiles = pl.cdiv(m, block_m)
    m_pad = n_tiles * block_m
    if m_pad != m:
        # zero columns contribute exactly 0 to sum/sumsq -> no stat masking
        patches = jnp.pad(patches, ((0, 0), (0, m_pad - m)))

    w_mat = conv_w.reshape(cout, cin * kh * kw).astype(jnp.bfloat16)  # (Cout,K)

    # --- pass 1: conv matmul + per-tile BN partial sums ----------------------
    y_conv, stats = pl.pallas_call(
        conv_stats_kernel,
        out_shape=(jax.ShapeDtypeStruct((cout, m_pad), jnp.float32),
                   jax.ShapeDtypeStruct((n_tiles, cout, 128), jnp.float32)),
        grid_spec=pl.GridSpec(
            grid=(n_tiles,),
            in_specs=[
                pl.BlockSpec((cout, k_dim), lambda i: (0, 0)),
                pl.BlockSpec((k_dim, block_m), lambda i: (0, i)),
            ],
            out_specs=[
                pl.BlockSpec((cout, block_m), lambda i: (0, i)),
                pl.BlockSpec((1, cout, 128), lambda i: (i, 0, 0)),
            ]),
        compiler_params=pltpu.CompilerParams(
            dimension_semantics=("parallel",)),
    )(w_mat, patches)

    # --- tiny (Cout,) reduction of partials + folding BN into scale/shift ----
    s1 = jnp.sum(stats[:, :, 0], axis=0)             # (Cout,)
    s2 = jnp.sum(stats[:, :, 1], axis=0)
    mean = s1 / m
    var = jnp.maximum(s2 / m - mean * mean, 0.0)     # clamp cancellation error
    inv = jax.lax.rsqrt(var + EPS)
    scale = (bn_gamma * inv).reshape(cout, 1).astype(jnp.float32)
    shift = (bn_beta - mean * bn_gamma * inv).reshape(cout, 1).astype(jnp.float32)
    alpha = prelu_a.reshape(1).astype(jnp.float32)

    # --- pass 2: normalize + PReLU, in place on y_conv -----------------------
    out_t = pl.pallas_call(
        bn_prelu_kernel,
        out_shape=jax.ShapeDtypeStruct((cout, m_pad), jnp.float32),
        grid_spec=pl.GridSpec(
            grid=(n_tiles,),
            in_specs=[
                pl.BlockSpec((cout, block_m), lambda i: (0, i)),
                pl.BlockSpec((cout, 1), lambda i: (0, 0)),
                pl.BlockSpec((cout, 1), lambda i: (0, 0)),
                pl.BlockSpec(memory_space=pltpu.MemorySpace.SMEM),
            ],
            out_specs=pl.BlockSpec((cout, block_m), lambda i: (0, i))),
        input_output_aliases={0: 0},
        compiler_params=pltpu.CompilerParams(
            dimension_semantics=("parallel",)),
    )(y_conv, scale, shift, alpha)

    # (Cout, M) -> (Cout, N, Hout, Wout) -> NCHW (leading-axis transpose only)
    out = out_t[:, :m].reshape(cout, n, hout, wout).transpose(1, 0, 2, 3)
    return out


def reference_forward(x, conv_w, conv_b, bn_gamma, bn_beta, prelu_a):
    """Pure-JAX reference with module semantics (conv inputs rounded to bf16 to
    match the kernel's bf16 MXU feed; accumulation and all BN math in f32)."""
    xr = x.astype(jnp.bfloat16).astype(jnp.float32)
    wr = conv_w.astype(jnp.bfloat16).astype(jnp.float32)
    y = jax.lax.conv_general_dilated(
        xr, wr, window_strides=(1, 2), padding=((0, 0), (2, 2)),
        dimension_numbers=("NCHW", "OIHW", "NCHW"),
        precision=jax.lax.Precision.HIGHEST)
    y = y + conv_b.reshape(1, -1, 1, 1)   # kept here; cancelled by BN below
    mean = y.mean(axis=(0, 2, 3), keepdims=True)
    var = ((y - mean) ** 2).mean(axis=(0, 2, 3), keepdims=True)
    y = (y - mean) / jnp.sqrt(var + EPS)
    y = y * bn_gamma.reshape(1, -1, 1, 1) + bn_beta.reshape(1, -1, 1, 1)
    return jnp.where(y >= 0, y, prelu_a.reshape(()) * y)


if __name__ == "__main__":
    # Conv2d(in=4, out=8, k=(2,5), stride=(1,2), padding=(0,2)) on (2,4,16,16).
    N, CIN, COUT, H, W = 2, 4, 8, 16, 16
    KH, KW = 2, 5

    key = jax.random.PRNGKey(0)
    kx, kw_, kb = jax.random.split(key, 3)

    x = jax.random.normal(kx, (N, CIN, H, W), dtype=jnp.float32)

    # Deterministic parameter init (PyTorch-like uniform bounds).
    fan_in = CIN * KH * KW
    bound = 1.0 / (fan_in ** 0.5)
    conv_w = jax.random.uniform(kw_, (COUT, CIN, KH, KW),
                                minval=-bound, maxval=bound, dtype=jnp.float32)
    conv_b = jax.random.uniform(kb, (COUT,),
                                minval=-bound, maxval=bound, dtype=jnp.float32)
    bn_gamma = jnp.ones((COUT,), jnp.float32)      # BatchNorm2d default init
    bn_beta = jnp.zeros((COUT,), jnp.float32)
    prelu_a = jnp.full((1,), 0.25, jnp.float32)    # PReLU default init
    # TODO(synk): BatchNorm running_mean/running_var bookkeeping is training
    # state mutation, not part of the forward output; not modeled.

    # block_m=128 -> 2 M-tiles (exercises tiling + zero-padded last tile).
    fwd = jax.jit(functools.partial(cnn_block_forward, block_m=128))
    out = fwd(x, conv_w, conv_b, bn_gamma, bn_beta, prelu_a)
    out = jax.block_until_ready(out)

    ref = reference_forward(x, conv_w, conv_b, bn_gamma, bn_beta, prelu_a)
    hout = H - KH + 1
    wout = (W + 2 * 2 - KW) // 2 + 1
    assert out.shape == (N, COUT, hout, wout), out.shape
    assert jnp.allclose(out, ref, rtol=1e-3, atol=1e-3), float(
        jnp.max(jnp.abs(out - ref)))

    print("KERNEL_OK")
</pallas_src>

<mosaic_0001>
module attributes {stable_mosaic.version = 11 : i64} {
  func.func @conv_stats_kernel(%arg0: i32, %arg1: memref<8x40xbf16, #tpu.memory_space<vmem>>, %arg2: memref<40x128xbf16, #tpu.memory_space<vmem>>, %arg3: memref<8x128xf32, #tpu.memory_space<vmem>>, %arg4: memref<1x8x128xf32, #tpu.memory_space<vmem>>) attributes {dimension_semantics = [#tpu.dimension_semantics<parallel>], iteration_bounds = array<i64: 2>, scalar_prefetch = 0 : i64, scratch_operands = 0 : i64, tpu.core_type = #tpu.core_type<tc>, window_params = [{pipeline_mode = #tpu.pipeline_mode<synchronous>, transform_indices = @transform_0, window_bounds = array<i64: 8, 40>}, {transform_indices = @transform_1, window_bounds = array<i64: 40, 128>}, {transform_indices = @transform_2, window_bounds = array<i64: 8, 128>}, {transform_indices = @transform_3, window_bounds = array<i64: 1, 8, 128>}]} {
    %c0 = arith.constant 0 : index
    %c0_0 = arith.constant 0 : index
    %0 = vector.load %arg1[%c0, %c0_0] : memref<8x40xbf16, #tpu.memory_space<vmem>>, vector<8x40xbf16>
    %c0_1 = arith.constant 0 : index
    %c0_2 = arith.constant 0 : index
    %1 = vector.load %arg2[%c0_1, %c0_2] : memref<40x128xbf16, #tpu.memory_space<vmem>>, vector<40x128xbf16>
    %cst = arith.constant dense<0.000000e+00> : vector<8x128xf32>
    %2 = tpu.matmul %0, %1, %cst {dimension_numbers = #tpu.dot_dimension_numbers<[1], [0], [0], [1], [0, 0, 1, 1], [], []>} : vector<8x40xbf16>, vector<40x128xbf16>, vector<8x128xf32> -> vector<8x128xf32>
    %c0_3 = arith.constant 0 : index
    %c0_4 = arith.constant 0 : index
    %3 = vector.load %arg3[%c0_3, %c0_4] : memref<8x128xf32, #tpu.memory_space<vmem>>, vector<8x128xf32>
    tpu.vector_store %arg3[%c0_3, %c0_4], %2 {strides = array<i32>} : memref<8x128xf32, #tpu.memory_space<vmem>>, vector<8x128xf32>,
    %cst_5 = arith.constant dense<0.000000e+00> : vector<8xf32>
    %4 = vector.multi_reduction <add>, %2, %cst_5 [1] : vector<8x128xf32> to vector<8xf32>
    %5 = vector.shape_cast %4 : vector<8xf32> to vector<8x1xf32>
    %6 = arith.mulf %2, %2 : vector<8x128xf32>
    %cst_6 = arith.constant dense<0.000000e+00> : vector<8xf32>
    %7 = vector.multi_reduction <add>, %6, %cst_6 [1] : vector<8x128xf32> to vector<8xf32>
    %8 = vector.shape_cast %7 : vector<8xf32> to vector<8x1xf32>
    %9 = tpu.iota {dimensions = array<i32: 1>} : vector<8x128xi32>
    %c0_i32 = arith.constant 0 : i32
    %10 = vector.broadcast %c0_i32 : i32 to vector<8x128xi32>
    %11 = arith.cmpi eq, %9, %10 : vector<8x128xi32>
    %c1_i32 = arith.constant 1 : i32
    %12 = vector.broadcast %c1_i32 : i32 to vector<8x128xi32>
    %13 = arith.cmpi eq, %9, %12 : vector<8x128xi32>
    %cst_7 = arith.constant 0.000000e+00 : f32
    %14 = vector.shape_cast %8 : vector<8x1xf32> to vector<8x1xf32>
    %15 = vector.broadcast %14 : vector<8x1xf32> to vector<8x128xf32>
    %16 = vector.broadcast %cst_7 : f32 to vector<8x128xf32>
    %17 = arith.select %13, %15, %16 : vector<8x128xi1>, vector<8x128xf32>
    %18 = vector.shape_cast %5 : vector<8x1xf32> to vector<8x1xf32>
    %19 = vector.broadcast %18 : vector<8x1xf32> to vector<8x128xf32>
    %20 = arith.select %11, %19, %17 : vector<8x128xi1>, vector<8x128xf32>
    %c0_8 = arith.constant 0 : index
    %c0_9 = arith.constant 0 : index
    %c0_10 = arith.constant 0 : index
    %21 = vector.load %arg4[%c0_8, %c0_9, %c0_10] : memref<1x8x128xf32, #tpu.memory_space<vmem>>, vector<1x8x128xf32>
    %22 = vector.shape_cast %21 : vector<1x8x128xf32> to vector<8x128xf32>
    %23 = vector.shape_cast %20 : vector<8x128xf32> to vector<1x8x128xf32>
    tpu.vector_store %arg4[%c0_8, %c0_9, %c0_10], %23 {strides = array<i32>} : memref<1x8x128xf32, #tpu.memory_space<vmem>>, vector<1x8x128xf32>,
    return
  }
  func.func @transform_0(%arg0: i32) -> (i32, i32) {
    %c0_i32 = arith.constant 0 : i32
    %c0_i32_0 = arith.constant 0 : i32
    %c0_i32_1 = arith.constant 0 : i32
    return %c0_i32, %c0_i32_0 : i32, i32
  }
  func.func @transform_1(%arg0: i32) -> (i32, i32) {
    %c0_i32 = arith.constant 0 : i32
    %c0_i32_0 = arith.constant 0 : i32
    return %c0_i32, %arg0 : i32, i32
  }
  func.func @transform_2(%arg0: i32) -> (i32, i32) {
    %c0_i32 = arith.constant 0 : i32
    %c0_i32_0 = arith.constant 0 : i32
    return %c0_i32, %arg0 : i32, i32
  }
  func.func @transform_3(%arg0: i32) -> (i32, i32, i32) {
    %c0_i32 = arith.constant 0 : i32
    %c0_i32_0 = arith.constant 0 : i32
    %c0_i32_1 = arith.constant 0 : i32
    return %arg0, %c0_i32, %c0_i32_0 : i32, i32, i32
  }
}

module attributes {stable_mosaic.version = 11 : i64} {
  func.func @bn_prelu_kernel(%arg0: i32, %arg1: memref<8x128xf32, #tpu.memory_space<vmem>>, %arg2: memref<8x1xf32, #tpu.memory_space<vmem>>, %arg3: memref<8x1xf32, #tpu.memory_space<vmem>>, %arg4: memref<1xf32, #tpu.memory_space<smem>>, %arg5: memref<8x128xf32, #tpu.memory_space<vmem>>) attributes {dimension_semantics = [#tpu.dimension_semantics<parallel>], iteration_bounds = array<i64: 2>, scalar_prefetch = 0 : i64, scratch_operands = 0 : i64, tpu.core_type = #tpu.core_type<tc>, window_params = [{transform_indices = @transform_0, window_bounds = array<i64: 8, 128>}, {pipeline_mode = #tpu.pipeline_mode<synchronous>, transform_indices = @transform_1, window_bounds = array<i64: 8, 1>}, {pipeline_mode = #tpu.pipeline_mode<synchronous>, transform_indices = @transform_2, window_bounds = array<i64: 8, 1>}, {transform_indices = @transform_3, window_bounds = array<i64: 1>}, {transform_indices = @transform_4, window_bounds = array<i64: 8, 128>}]} {
    %c0 = arith.constant 0 : index
    %c0_0 = arith.constant 0 : index
    %0 = vector.load %arg1[%c0, %c0_0] : memref<8x128xf32, #tpu.memory_space<vmem>>, vector<8x128xf32>
    %c0_1 = arith.constant 0 : index
    %c0_2 = arith.constant 0 : index
    %1 = vector.load %arg2[%c0_1, %c0_2] : memref<8x1xf32, #tpu.memory_space<vmem>>, vector<8x1xf32>
    %2 = vector.broadcast %1 : vector<8x1xf32> to vector<8x128xf32>
    %3 = arith.mulf %0, %2 : vector<8x128xf32>
    %c0_3 = arith.constant 0 : index
    %c0_4 = arith.constant 0 : index
    %4 = vector.load %arg3[%c0_3, %c0_4] : memref<8x1xf32, #tpu.memory_space<vmem>>, vector<8x1xf32>
    %5 = vector.broadcast %4 : vector<8x1xf32> to vector<8x128xf32>
    %6 = arith.addf %3, %5 : vector<8x128xf32>
    %c0_5 = arith.constant 0 : index
    %7 = memref.load %arg4[%c0_5] : memref<1xf32, #tpu.memory_space<smem>>
    %cst = arith.constant 0.000000e+00 : f32
    %8 = vector.broadcast %cst : f32 to vector<8x128xf32>
    %9 = arith.cmpf oge, %6, %8 : vector<8x128xf32>
    %10 = vector.broadcast %7 : f32 to vector<8x128xf32>
    %11 = arith.mulf %10, %6 : vector<8x128xf32>
    %12 = arith.select %9, %6, %11 : vector<8x128xi1>, vector<8x128xf32>
    %c0_6 = arith.constant 0 : index
    %c0_7 = arith.constant 0 : index
    %13 = vector.load %arg5[%c0_6, %c0_7] : memref<8x128xf32, #tpu.memory_space<vmem>>, vector<8x128xf32>
    tpu.vector_store %arg5[%c0_6, %c0_7], %12 {strides = array<i32>} : memref<8x128xf32, #tpu.memory_space<vmem>>, vector<8x128xf32>,
    return
  }
  func.func @transform_0(%arg0: i32) -> (i32, i32) {
    %c0_i32 = arith.constant 0 : i32
    %c0_i32_0 = arith.constant 0 : i32
    return %c0_i32, %arg0 : i32, i32
  }
  func.func @transform_1(%arg0: i32) -> (i32, i32) {
    %c0_i32 = arith.constant 0 : i32
    %c0_i32_0 = arith.constant 0 : i32
    %c0_i32_1 = arith.constant 0 : i32
    return %c0_i32, %c0_i32_0 : i32, i32
  }
  func.func @transform_2(%arg0: i32) -> (i32, i32) {
    %c0_i32 = arith.constant 0 : i32
    %c0_i32_0 = arith.constant 0 : i32
    %c0_i32_1 = arith.constant 0 : i32
    return %c0_i32, %c0_i32_0 : i32, i32
  }
  func.func @transform_3(%arg0: i32) -> i32 {
    %c0_i32 = arith.constant 0 : i32
    %c0_i32_0 = arith.constant 0 : i32
    return %c0_i32 : i32
  }
  func.func @transform_4(%arg0: i32) -> (i32, i32) {
    %c0_i32 = arith.constant 0 : i32
    %c0_i32_0 = arith.constant 0 : i32
    return %c0_i32, %arg0 : i32, i32
  }
}

</mosaic_0001>

<llo_original>
// kernel: cnn_block_forward.2
$region0: #{cnn_block_forward.2}
  #allocation0 [shape = 'u32[]', space=smem, size = 0x4, offset = 0x4, fixed_abs, tag = 'smem constant byte address 0x4 - core index']
  #allocation1 [shape = 'u32[72,128]{1,0:T(1,128)}', space=vmem, size = 0x9000, scoped, tag = 'internal scratch']
  %s0 = inlined_call_operand.vmem [shape: bf16[8,40], index: 0, kind: input, shape index: {}]
  %s1 = inlined_call_operand.vmem [shape: bf16[40,256], index: 1, kind: input, shape index: {}]
  %s2 = inlined_call_operand.vmem [shape: f32[8,256], index: 2, kind: output, shape index: {0}]
  %s3 = inlined_call_operand.vmem [shape: f32[2,8,128], index: 3, kind: output, shape index: {1}]
  %4 = xla_tuple %s2, %s3
  %s5 = sld [smem:[#allocation0]]
  $region90: #{cnn_block_forward.2} parent=0
    _
  %s7 = ssub.s32 1, %s5
  %s8 = scalar_select 0, %s7, %s5
  $region1: #{cnn_block_forward.2} parent=0
    #allocation2 [shape = 'u8[20480]{0}', space=vmem, size = 0x5000, scoped, tag = 'input window, operand 1']
    loop: start=0, step=1, limit=4
    $region2: #{cnn_block_forward.2} parent=1 // loop_pre_header
      _
    $region3: #{cnn_block_forward.2} parent=1 // loop_header
      %s10 = sphi 0, %s14
      %p11 = scmp.ge.s32.totalorder %s10, 4
      %s18 = sphi 0, %s18
      %s20 = sphi 0, %s18
      %s21 = sphi 0, %s20
      %s35 = sphi 0, %s21
      %s41 = sphi 0, %s43
      %s44 = sphi 0, %s41
      %s45 = sphi 0, %s44
      %s61 = sphi 0, %s45
      %s67 = sphi 0, %s69
      %s70 = sphi 0, %s67
      %s71 = sphi 0, %s70
      %s87 = sphi 0, %s71
      %s93 = sphi 0, %s95
      %s96 = sphi 0, %s93
      %s97 = sphi 0, %s96
      %s113 = sphi 0, %s97
    $region4: #{cnn_block_forward.2} parent=1 // loop_header_branch
      %13 = sbr.rel (%p11) target = $region8
    $region5: #{cnn_block_forward.2} parent=1 // loop_body
      %s15 = ssub.s32 %s10, 1
      %s16 = ssub.s32 %s10, 2
      %s17 = sadd.s32 %s10, 1
      %s19 = sadd.s32 %s18, 1
      %p22 = scmp.eq.s32.totalorder %s10, 1
      %p23 = scmp.ne.s32.totalorder %s18, %s20
      %p24 = scmp.eq.s32.totalorder %s10, 0
      %p25 = por %p23, %p24
      %p26 = scmp.ne.s32.totalorder %s18, %s20
      %p27 = scmp.eq.s32.totalorder %s15, 1
      %p28 = por %p26, %p27
      %p29 = scmp.ne.s32.totalorder %s20, %s21
      %p30 = scmp.eq.s32.totalorder %s15, 0
      %p31 = por %p29, %p30
      %p32 = scmp.ne.s32.totalorder %s20, %s21
      %p33 = scmp.eq.s32.totalorder %s16, 1
      %p34 = por %p32, %p33
      %p36 = scmp.ne.s32.totalorder %s21, %s35
      %p37 = scmp.eq.s32.totalorder %s16, 0
      %p38 = por %p36, %p37
      %s39 = ssub.s32 %s10, %s17
      %p40 = scmp.eq.s32.totalorder %s39, 0
      %s42 = sadd.s32 %s41, 1
      %s43 = scalar_select %p40, %s41, %s42
      %p46 = pneg %p40
      %p47 = scmp.eq.s32.totalorder %s10, 1
      %p48 = por %p46, %p47
      %p49 = scmp.ne.s32.totalorder %s41, %s44
      %p50 = scmp.eq.s32.totalorder %s10, 0
      %p51 = por %p49, %p50
      %p52 = scmp.ne.s32.totalorder %s41, %s44
      %p53 = scmp.eq.s32.totalorder %s15, 1
      %p54 = por %p52, %p53
      %p55 = scmp.ne.s32.totalorder %s44, %s45
      %p56 = scmp.eq.s32.totalorder %s15, 0
      %p57 = por %p55, %p56
      %p58 = scmp.ne.s32.totalorder %s44, %s45
      %p59 = scmp.eq.s32.totalorder %s16, 1
      %p60 = por %p58, %p59
      %p62 = scmp.ne.s32.totalorder %s45, %s61
      %p63 = scmp.eq.s32.totalorder %s16, 0
      %p64 = por %p62, %p63
      %s65 = ssub.s32 %s10, %s17
      %p66 = scmp.eq.s32.totalorder %s65, 0
      %s68 = sadd.s32 %s67, 1
      %s69 = scalar_select %p66, %s67, %s68
      %p72 = pneg %p66
      %p73 = scmp.eq.s32.totalorder %s10, 1
      %p74 = por %p72, %p73
      %p75 = scmp.ne.s32.totalorder %s67, %s70
      %p76 = scmp.eq.s32.totalorder %s10, 0
      %p77 = por %p75, %p76
      %p78 = scmp.ne.s32.totalorder %s67, %s70
      %p79 = scmp.eq.s32.totalorder %s15, 1
      %p80 = por %p78, %p79
      %p81 = scmp.ne.s32.totalorder %s70, %s71
      %p82 = scmp.eq.s32.totalorder %s15, 0
      %p83 = por %p81, %p82
      %p84 = scmp.ne.s32.totalorder %s70, %s71
      %p85 = scmp.eq.s32.totalorder %s16, 1
      %p86 = por %p84, %p85
      %p88 = scmp.ne.s32.totalorder %s71, %s87
      %p89 = scmp.eq.s32.totalorder %s16, 0
      %p90 = por %p88, %p89
      %s91 = ssub.s32 %s10, %s17
      %p92 = scmp.eq.s32.totalorder %s91, 0
      %s94 = sadd.s32 %s93, 1
      %s95 = scalar_select %p92, %s93, %s94
      %p98 = pneg %p92
      %p99 = scmp.eq.s32.totalorder %s10, 1
      %p100 = por %p98, %p99
      %p101 = scmp.ne.s32.totalorder %s93, %s96
      %p102 = scmp.eq.s32.totalorder %s10, 0
      %p103 = por %p101, %p102
      %p104 = scmp.ne.s32.totalorder %s93, %s96
      %p105 = scmp.eq.s32.totalorder %s15, 1
      %p106 = por %p104, %p105
      %p107 = scmp.ne.s32.totalorder %s96, %s97
      %p108 = scmp.eq.s32.totalorder %s15, 0
      %p109 = por %p107, %p108
      %p110 = scmp.ne.s32.totalorder %s96, %s97
      %p111 = scmp.eq.s32.totalorder %s16, 1
      %p112 = por %p110, %p111
      %p114 = scmp.ne.s32.totalorder %s97, %s113
      %p115 = scmp.eq.s32.totalorder %s16, 0
      %p116 = por %p114, %p115
      %p117 = scmp.le.s32.totalorder 1, %s10
      %p118 = scmp.lt.s32.totalorder %s10, 3
      %p119 = pnand %p117, %p118
      %p120 = pneg %p119
      // Predicated region
      $region9: #{cnn_block_forward.2} parent=5 // pred_check
        _
      $region10: #{cnn_block_forward.2} parent=5 // pred_check_branch
        %122 = sbr.rel (%p119) target = $region12
      $region11: #{cnn_block_forward.2} parent=5 // pred_region
        %s123 = ssub.s32 %s10, 1
        // Predicated region
        $region13: #{cnn_block_forward.2} parent=11 // pred_check
          %p124 = pneg %p31
        $region14: #{cnn_block_forward.2} parent=11 // pred_check_branch
          %126 = sbr.rel (%p124) target = $region16
        $region15: #{cnn_block_forward.2} parent=11 // pred_region
          _
        $region16: #{cnn_block_forward.2} parent=11 // pred_fallthru
          _
      $region12: #{cnn_block_forward.2} parent=5 // pred_fallthru
        _
      %p127 = scmp.lt.s32.totalorder %s10, 2
      // Predicated region
      $region17: #{cnn_block_forward.2} parent=5 // pred_check
        %p128 = pneg %p127
      $region18: #{cnn_block_forward.2} parent=5 // pred_check_branch
        %130 = sbr.rel (%p128) target = $region20
      $region19: #{cnn_block_forward.2} parent=5 // pred_region
        // Predicated region
        $region21: #{cnn_block_forward.2} parent=19 // pred_check
          %p131 = pneg %p51
        $region22: #{cnn_block_forward.2} parent=19 // pred_check_branch
          %133 = sbr.rel (%p131) target = $region24
        $region23: #{cnn_block_forward.2} parent=19 // pred_region
          %s134 = sand.u32 %s41, 1
          %s135 = sand.u32 %s41, 1
          %s136 = smul.addr %s135, 20
          %s137 = scalar_lea.vmem [#allocation2], %s136
          %s138 = smul.addr %s10, 4
          %s139 = scalar_lea.vmem %s1, %s138
          // Predicated region
          $region25: #{cnn_block_forward.2} parent=23 // pred_check
            _
          $region26: #{cnn_block_forward.2} parent=23 // pred_check_branch
            %141 = sbr.rel (0) target = $region28
          $region27: #{cnn_block_forward.2} parent=23 // pred_region
            // Predicated region
            $region29: #{cnn_block_forward.2} parent=27 // pred_check
              _
            $region30: #{cnn_block_forward.2} parent=27 // pred_check_branch
              %143 = sbr.rel target = $region32
            $region31: #{cnn_block_forward.2} parent=27 // pred_region
              // Predicated region
              $region44: #{cnn_block_forward.2} parent=31 // pred_check
                _
              $region45: #{cnn_block_forward.2} parent=31 // pred_check_branch
                %167 = sbr.rel (0) target = $region47
              $region46: #{cnn_block_forward.2} parent=31 // pred_region
                loop: start=0, step=1, limit=1
                $region48: #{cnn_block_forward.2} parent=46 // loop_pre_header
                  _
                $region49: #{cnn_block_forward.2} parent=46 // loop_header
                  %s169 = sphi 0, %s173
                  %p170 = scmp.ge.s32.totalorder %s169, 1
                  %s174 = sphi %s139, %s139
                  %s175 = sphi %s137, %s137
                $region50: #{cnn_block_forward.2} parent=46 // loop_header_branch
                  %172 = sbr.rel (%p170) target = $region54
                $region51: #{cnn_block_forward.2} parent=46 // loop_body
                  _
                $region52: #{cnn_block_forward.2} parent=46 // loop_footer
                  %s173 = sadd.s32 1, %s169
                $region53: #{cnn_block_forward.2} parent=46 // loop_footer_branch
                  %168 = sbr.rel target = $region49
                $region54: #{cnn_block_forward.2} parent=46 // loop_exit
                  _
                %s177 = ssub.s32 16, 1
                loop: start=0, step=1, limit=1
                $region55: #{cnn_block_forward.2} parent=46 // loop_pre_header
                  _
                $region56: #{cnn_block_forward.2} parent=46 // loop_header
                  %s179 = sphi 0, %s183
                  %p180 = scmp.ge.s32.totalorder %s179, 1
                  %s184 = sphi %s139, %s139
                  %s185 = sphi %s137, %s137
                $region57: #{cnn_block_forward.2} parent=46 // loop_header_branch
                  %182 = sbr.rel (%p180) target = $region61
                $region58: #{cnn_block_forward.2} parent=46 // loop_body
                  %v186 = vld [vmem:[%s184] sm:%s177]
                  %187 = vst [vmem:[%s185] sm:%s177] %v186
                  %v188 = vld [vmem:[%s184 + $0x8] sm:%s177]
                  %189 = vst [vmem:[%s185 + $0x4] sm:%s177] %v188
                  %v190 = vld [vmem:[%s184 + $0x10] sm:%s177]
                  %191 = vst [vmem:[%s185 + $0x8] sm:%s177] %v190
                  %v192 = vld [vmem:[%s184 + $0x18] sm:%s177]
                  %193 = vst [vmem:[%s185 + $0xc] sm:%s177] %v192
                  %v194 = vld [vmem:[%s184 + $0x20] sm:%s177]
                  %195 = vst [vmem:[%s185 + $0x10] sm:%s177] %v194
                $region59: #{cnn_block_forward.2} parent=46 // loop_footer
                  %s183 = sadd.s32 1, %s179
                $region60: #{cnn_block_forward.2} parent=46 // loop_footer_branch
                  %178 = sbr.rel target = $region56
                $region61: #{cnn_block_forward.2} parent=46 // loop_exit
                  _
              $region47: #{cnn_block_forward.2} parent=31 // pred_fallthru
                _
            $region32: #{cnn_block_forward.2} parent=27 // pred_fallthru
              _
            // Predicated region
            $region33: #{cnn_block_forward.2} parent=27 // pred_check
              _
            $region34: #{cnn_block_forward.2} parent=27 // pred_check_branch
              %145 = sbr.rel (0) target = $region36
            $region35: #{cnn_block_forward.2} parent=27 // pred_region
              %s147 = ssub.s32 16, 1
              loop: start=0, step=1, limit=1
              $region37: #{cnn_block_forward.2} parent=35 // loop_pre_header
                _
              $region38: #{cnn_block_forward.2} parent=35 // loop_header
                %s149 = sphi 0, %s153
                %p150 = scmp.ge.s32.totalorder %s149, 1
                %s154 = sphi %s139, %s139
                %s155 = sphi %s137, %s137
              $region39: #{cnn_block_forward.2} parent=35 // loop_header_branch
                %152 = sbr.rel (%p150) target = $region43
              $region40: #{cnn_block_forward.2} parent=35 // loop_body
                %v156 = vld [vmem:[%s154] sm:%s147]
                %157 = vst [vmem:[%s155] sm:%s147] %v156
                %v158 = vld [vmem:[%s154 + $0x8] sm:%s147]
                %159 = vst [vmem:[%s155 + $0x4] sm:%s147] %v158
                %v160 = vld [vmem:[%s154 + $0x10] sm:%s147]
                %161 = vst [vmem:[%s155 + $0x8] sm:%s147] %v160
                %v162 = vld [vmem:[%s154 + $0x18] sm:%s147]
                %163 = vst [vmem:[%s155 + $0xc] sm:%s147] %v162
                %v164 = vld [vmem:[%s154 + $0x20] sm:%s147]
                %165 = vst [vmem:[%s155 + $0x10] sm:%s147] %v164
              $region41: #{cnn_block_forward.2} parent=35 // loop_footer
                %s153 = sadd.s32 1, %s149
              $region42: #{cnn_block_forward.2} parent=35 // loop_footer_branch
                %148 = sbr.rel target = $region38
              $region43: #{cnn_block_forward.2} parent=35 // loop_exit
                _
            $region36: #{cnn_block_forward.2} parent=27 // pred_fallthru
              _
          $region28: #{cnn_block_forward.2} parent=23 // pred_fallthru
            _
          %196 = vnop
        $region24: #{cnn_block_forward.2} parent=19 // pred_fallthru
          _
      $region20: #{cnn_block_forward.2} parent=5 // pred_fallthru
        _
      %p197 = scmp.le.s32.totalorder 1, %s10
      %p198 = scmp.lt.s32.totalorder %s10, 3
      %p199 = pnand %p197, %p198
      %p200 = pneg %p199
      // Predicated region
      $region62: #{cnn_block_forward.2} parent=5 // pred_check
        _
      $region63: #{cnn_block_forward.2} parent=5 // pred_check_branch
        %202 = sbr.rel (%p199) target = $region65
      $region64: #{cnn_block_forward.2} parent=5 // pred_region
        %s203 = ssub.s32 %s10, 1
        %s204 = sand.u32 %s44, 1
        %s205 = sand.u32 %s44, 1
        %s206 = smul.addr %s205, 20
        %s207 = scalar_lea.vmem [#allocation2], %s206
        // Predicated region
        $region66: #{cnn_block_forward.2} parent=64 // pred_check
          %p208 = pneg %p57
        $region67: #{cnn_block_forward.2} parent=64 // pred_check_branch
          %210 = sbr.rel (%p208) target = $region69
        $region68: #{cnn_block_forward.2} parent=64 // pred_region
          _
        $region69: #{cnn_block_forward.2} parent=64 // pred_fallthru
          _
        %p211 = pneg %p31
        %p212 = pneg %p28
        %s213 = sand.u32 %s44, 1
        %s214 = sand.u32 %s44, 1
        %s215 = smul.addr %s214, 20
        %s216 = scalar_lea.vmem [#allocation2], %s215
        %p217 = pneg %p57
        %p218 = pneg %p54
        %p219 = pneg %p83
        %p220 = pneg %p80
        %p221 = scmp.lt.s32.totalorder %s15, 1
        %s222 = scalar_select %p221, %s15, 1
        %s223 = smul.addr %s222, 8
        %s224 = scalar_lea.vmem %s2, %s223
        %p225 = pneg %p109
        %p226 = pneg %p106
        %p227 = scmp.lt.s32.totalorder %s15, 1
        %s228 = scalar_select %p227, %s15, 1
        %s229 = smul.addr %s228, 8
        %s230 = scalar_lea.vmem %s3, %s229
        %p231 = scmp.lt.s32.totalorder %s15, 1
        %s232 = scalar_select %p231, %s15, 1
        %s233 = smul.addr %s232, 8
        %s234 = scalar_lea.vmem %s2, %s233
        %p235 = scmp.lt.s32.totalorder %s15, 1
        %s236 = scalar_select %p235, %s15, 1
        %s237 = smul.addr %s236, 8
        %s238 = scalar_lea.vmem %s3, %s237
        %v240 = vld [vmem:[%s0] sm:$0xf]
        %v241 = vld [vmem:[%s207] sm:$0xf]
        %v242 = vld [vmem:[%s207 + $0x4] sm:$0xf]
        %v243 = vld [vmem:[%s207 + $0x8] sm:$0xf]
        %v244 = vld [vmem:[%s207 + $0xc] sm:$0xf]
        %v245 = vld [vmem:[%s207 + $0x10] sm:$0xf]
        %v251 = vunpack.c.l.b16 %v241
        %v252 = vunpack.c.l.b16 %v242
        %v253 = vunpack.c.l.b16 %v243
        %v254 = vunpack.c.l.b16 %v244
        %v255 = vunpack.c.l.b16 %v245
        %v256 = vpack.c.b16 %v252, %v251
        %v257 = vpack.c.b16 %v254, %v253
        %v258 = vpack.c.b16 %v255, %v255
        %vm261 = vcmask 326656
        %v263 = vsel %vm261, %v240, 0
        %vm265 = vcmask 1043456
        %v267 = vsel %vm265, %v258, 0
        %269 = vmatpush.bf16.msra.mxu0 0
        %270 = vmatpush.bf16.msra.mxu0 0
        %271 = vmatpush.bf16.msra.mxu0 0
        %272 = vmatpush.bf16.msra.mxu0 0
        %273 = vmatpush.bf16.msra.mxu0 0
        %274 = vmatpush.bf16.msra.mxu0 %v267
        %275 = vmatpush.bf16.msra.mxu0 %v257
        %276 = vmatpush.bf16.msra.mxu0 %v256
        %277 = vmatmul.bf16.gmra.mxu0 %v263
        %v278 = vpop.f32.mrf.mxu0
        %v279 = vadd.f32 0.0, %v278
        %v280 = vpop.f32.mrf.mxu0
        %281 = vdwg.mxu0
        %282 = vst [vmem:[%s234] sm:$0xff] %v279
        %283 = vadd.xlane.f32.xlu0 %v279
        %v284 = vpop.xlane.xlu0 %283
        %v285 = vmul.f32 %v279, %v279
        %286 = vadd.xlane.f32.xlu0 %v285
        %v287 = vpop.xlane.xlu0 %286
        %v288 = vlaneseq
        %v289 = vand.u32 %v288, 127
        %vm290 = vcmp.eq.s32.totalorder %v289, 0
        %vm291 = vcmp.eq.s32.totalorder %v289, 1
        %v292 = vsel %vm291, %v287, 0.0
        %v293 = vsel %vm290, %v284, %v292
        %294 = vst [vmem:[%s238] sm:$0xff] %v293
        %p295 = scmp.lt.s32.totalorder %s15, 1
        %s296 = scalar_select %p295, %s15, 1
        %s297 = smul.addr %s296, 8
        %s298 = scalar_lea.vmem %s2, %s297
        %p299 = scmp.lt.s32.totalorder %s15, 1
        %s300 = scalar_select %p299, %s15, 1
        %s301 = smul.addr %s300, 8
        %s302 = scalar_lea.vmem %s3, %s301
        // Predicated region
        $region70: #{cnn_block_forward.2} parent=64 // pred_check
          %p303 = pneg %p80
        $region71: #{cnn_block_forward.2} parent=64 // pred_check_branch
          %305 = sbr.rel (%p303) target = $region73
        $region72: #{cnn_block_forward.2} parent=64 // pred_region
          _
        $region73: #{cnn_block_forward.2} parent=64 // pred_fallthru
          _
        // Predicated region
        $region74: #{cnn_block_forward.2} parent=64 // pred_check
          %p306 = pneg %p106
        $region75: #{cnn_block_forward.2} parent=64 // pred_check_branch
          %308 = sbr.rel (%p306) target = $region77
        $region76: #{cnn_block_forward.2} parent=64 // pred_region
          _
        $region77: #{cnn_block_forward.2} parent=64 // pred_fallthru
          _
      $region65: #{cnn_block_forward.2} parent=5 // pred_fallthru
        _
      %p309 = scmp.le.s32.totalorder 2, %s10
      // Predicated region
      $region78: #{cnn_block_forward.2} parent=5 // pred_check
        %p310 = pneg %p309
      $region79: #{cnn_block_forward.2} parent=5 // pred_check_branch
        %312 = sbr.rel (%p310) target = $region81
      $region80: #{cnn_block_forward.2} parent=5 // pred_region
        %s313 = ssub.s32 %s10, 2
        // Predicated region
        $region82: #{cnn_block_forward.2} parent=80 // pred_check
          %p314 = pneg %p86
        $region83: #{cnn_block_forward.2} parent=80 // pred_check_branch
          %316 = sbr.rel (%p314) target = $region85
        $region84: #{cnn_block_forward.2} parent=80 // pred_region
          %p317 = scmp.lt.s32.totalorder %s16, 1
          %s318 = scalar_select %p317, %s16, 1
          %s319 = smul.addr %s318, 8
          %s320 = scalar_lea.vmem %s2, %s319
        $region85: #{cnn_block_forward.2} parent=80 // pred_fallthru
          _
        // Predicated region
        $region86: #{cnn_block_forward.2} parent=80 // pred_check
          %p321 = pneg %p112
        $region87: #{cnn_block_forward.2} parent=80 // pred_check_branch
          %323 = sbr.rel (%p321) target = $region89
        $region88: #{cnn_block_forward.2} parent=80 // pred_region
          %p324 = scmp.lt.s32.totalorder %s16, 1
          %s325 = scalar_select %p324, %s16, 1
          %s326 = smul.addr %s325, 8
          %s327 = scalar_lea.vmem %s3, %s326
        $region89: #{cnn_block_forward.2} parent=80 // pred_fallthru
          _
      $region81: #{cnn_block_forward.2} parent=5 // pred_fallthru
        _
    $region6: #{cnn_block_forward.2} parent=1 // loop_footer
      %s14 = sadd.s32 1, %s10
    $region7: #{cnn_block_forward.2} parent=1 // loop_footer_branch
      %9 = sbr.rel target = $region3
    $region8: #{cnn_block_forward.2} parent=1 // loop_exit
      _

// kernel: cnn_block_forward.3
$region0: #{cnn_block_forward.3}
  #allocation0 [shape = 'u32[]', space=smem, size = 0x4, offset = 0x4, fixed_abs, tag = 'smem constant byte address 0x4 - core index']
  #allocation1 [shape = 'u32[72,128]{1,0:T(1,128)}', space=vmem, size = 0x9000, scoped, tag = 'internal scratch']
  #allocation2 [shape = 'f32[1]{0:T(128)S(6)}', space=smem, size = 0x200, scoped, tag = 'scoped memory for cnn_block_forward.3']
  %s0 = inlined_call_operand.vmem [shape: f32[8,256], index: 0, kind: input, shape index: {}, may-alias: {0,4}]
  %s1 = inlined_call_operand.vmem [shape: f32[8,1], index: 1, kind: input, shape index: {}]
  %s2 = inlined_call_operand.vmem [shape: f32[8,1], index: 2, kind: input, shape index: {}]
  %s3 = inlined_call_operand.<no memory space> [shape: f32[1], index: 3, kind: input, shape index: {}]
  %s4 = inlined_call_operand.vmem [shape: f32[8,256], index: 4, kind: output, shape index: {}, may-alias: {0,4}]
  %s5 = sld [smem:[#allocation0]]
  $region49: #{cnn_block_forward.3} parent=0
    _
  %s7 = ssub.s32 1, %s5
  %s8 = scalar_select 0, %s7, %s5
  %9 = sst [smem:[#allocation2]] %s3
  loop: start=0, step=1, limit=4
  $region2: #{cnn_block_forward.3} parent=0 // loop_pre_header
    _
  $region3: #{cnn_block_forward.3} parent=0 // loop_header
    %s11 = sphi 0, %s15
    %p12 = scmp.ge.s32.totalorder %s11, 4
    %s21 = sphi 0, %s23
    %s24 = sphi 0, %s21
    %s25 = sphi 0, %s24
    %s41 = sphi 0, %s25
    %s45 = sphi 0, %s45
    %s47 = sphi 0, %s45
    %s48 = sphi 0, %s47
    %s62 = sphi 0, %s48
    %s66 = sphi 0, %s66
    %s68 = sphi 0, %s66
    %s69 = sphi 0, %s68
    %s83 = sphi 0, %s69
    %s87 = sphi 0, %s87
    %s89 = sphi 0, %s87
    %s90 = sphi 0, %s89
    %s104 = sphi 0, %s90
    %s110 = sphi 0, %s112
    %s113 = sphi 0, %s110
    %s114 = sphi 0, %s113
    %s130 = sphi 0, %s114
  $region4: #{cnn_block_forward.3} parent=0 // loop_header_branch
    %14 = sbr.rel (%p12) target = $region8
  $region5: #{cnn_block_forward.3} parent=0 // loop_body
    %s16 = ssub.s32 %s11, 1
    %s17 = ssub.s32 %s11, 2
    %s18 = sadd.s32 %s11, 1
    %s19 = ssub.s32 %s11, %s18
    %p20 = scmp.eq.s32.totalorder %s19, 0
    %s22 = sadd.s32 %s21, 1
    %s23 = scalar_select %p20, %s21, %s22
    %p26 = pneg %p20
    %p27 = scmp.eq.s32.totalorder %s11, 1
    %p28 = por %p26, %p27
    %p29 = scmp.ne.s32.totalorder %s21, %s24
    %p30 = scmp.eq.s32.totalorder %s11, 0
    %p31 = por %p29, %p30
    %p32 = scmp.ne.s32.totalorder %s21, %s24
    %p33 = scmp.eq.s32.totalorder %s16, 1
    %p34 = por %p32, %p33
    %p35 = scmp.ne.s32.totalorder %s24, %s25
    %p36 = scmp.eq.s32.totalorder %s16, 0
    %p37 = por %p35, %p36
    %p38 = scmp.ne.s32.totalorder %s24, %s25
    %p39 = scmp.eq.s32.totalorder %s17, 1
    %p40 = por %p38, %p39
    %p42 = scmp.ne.s32.totalorder %s25, %s41
    %p43 = scmp.eq.s32.totalorder %s17, 0
    %p44 = por %p42, %p43
    %s46 = sadd.s32 %s45, 1
    %p49 = scmp.eq.s32.totalorder %s11, 1
    %p50 = scmp.ne.s32.totalorder %s45, %s47
    %p51 = scmp.eq.s32.totalorder %s11, 0
    %p52 = por %p50, %p51
    %p53 = scmp.ne.s32.totalorder %s45, %s47
    %p54 = scmp.eq.s32.totalorder %s16, 1
    %p55 = por %p53, %p54
    %p56 = scmp.ne.s32.totalorder %s47, %s48
    %p57 = scmp.eq.s32.totalorder %s16, 0
    %p58 = por %p56, %p57
    %p59 = scmp.ne.s32.totalorder %s47, %s48
    %p60 = scmp.eq.s32.totalorder %s17, 1
    %p61 = por %p59, %p60
    %p63 = scmp.ne.s32.totalorder %s48, %s62
    %p64 = scmp.eq.s32.totalorder %s17, 0
    %p65 = por %p63, %p64
    %s67 = sadd.s32 %s66, 1
    %p70 = scmp.eq.s32.totalorder %s11, 1
    %p71 = scmp.ne.s32.totalorder %s66, %s68
    %p72 = scmp.eq.s32.totalorder %s11, 0
    %p73 = por %p71, %p72
    %p74 = scmp.ne.s32.totalorder %s66, %s68
    %p75 = scmp.eq.s32.totalorder %s16, 1
    %p76 = por %p74, %p75
    %p77 = scmp.ne.s32.totalorder %s68, %s69
    %p78 = scmp.eq.s32.totalorder %s16, 0
    %p79 = por %p77, %p78
    %p80 = scmp.ne.s32.totalorder %s68, %s69
    %p81 = scmp.eq.s32.totalorder %s17, 1
    %p82 = por %p80, %p81
    %p84 = scmp.ne.s32.totalorder %s69, %s83
    %p85 = scmp.eq.s32.totalorder %s17, 0
    %p86 = por %p84, %p85
    %s88 = sadd.s32 %s87, 1
    %p91 = scmp.eq.s32.totalorder %s11, 1
    %p92 = scmp.ne.s32.totalorder %s87, %s89
    %p93 = scmp.eq.s32.totalorder %s11, 0
    %p94 = por %p92, %p93
    %p95 = scmp.ne.s32.totalorder %s87, %s89
    %p96 = scmp.eq.s32.totalorder %s16, 1
    %p97 = por %p95, %p96
    %p98 = scmp.ne.s32.totalorder %s89, %s90
    %p99 = scmp.eq.s32.totalorder %s16, 0
    %p100 = por %p98, %p99
    %p101 = scmp.ne.s32.totalorder %s89, %s90
    %p102 = scmp.eq.s32.totalorder %s17, 1
    %p103 = por %p101, %p102
    %p105 = scmp.ne.s32.totalorder %s90, %s104
    %p106 = scmp.eq.s32.totalorder %s17, 0
    %p107 = por %p105, %p106
    %s108 = ssub.s32 %s11, %s18
    %p109 = scmp.eq.s32.totalorder %s108, 0
    %s111 = sadd.s32 %s110, 1
    %s112 = scalar_select %p109, %s110, %s111
    %p115 = pneg %p109
    %p116 = scmp.eq.s32.totalorder %s11, 1
    %p117 = por %p115, %p116
    %p118 = scmp.ne.s32.totalorder %s110, %s113
    %p119 = scmp.eq.s32.totalorder %s11, 0
    %p120 = por %p118, %p119
    %p121 = scmp.ne.s32.totalorder %s110, %s113
    %p122 = scmp.eq.s32.totalorder %s16, 1
    %p123 = por %p121, %p122
    %p124 = scmp.ne.s32.totalorder %s113, %s114
    %p125 = scmp.eq.s32.totalorder %s16, 0
    %p126 = por %p124, %p125
    %p127 = scmp.ne.s32.totalorder %s113, %s114
    %p128 = scmp.eq.s32.totalorder %s17, 1
    %p129 = por %p127, %p128
    %p131 = scmp.ne.s32.totalorder %s114, %s130
    %p132 = scmp.eq.s32.totalorder %s17, 0
    %p133 = por %p131, %p132
    %p134 = scmp.le.s32.totalorder 1, %s11
    %p135 = scmp.lt.s32.totalorder %s11, 3
    %p136 = pnand %p134, %p135
    %p137 = pneg %p136
    // Predicated region
    $region9: #{cnn_block_forward.3} parent=5 // pred_check
      _
    $region10: #{cnn_block_forward.3} parent=5 // pred_check_branch
      %139 = sbr.rel (%p136) target = $region12
    $region11: #{cnn_block_forward.3} parent=5 // pred_region
      %s140 = ssub.s32 %s11, 1
      // Predicated region
      $region13: #{cnn_block_forward.3} parent=11 // pred_check
        %p141 = pneg %p58
      $region14: #{cnn_block_forward.3} parent=11 // pred_check_branch
        %143 = sbr.rel (%p141) target = $region16
      $region15: #{cnn_block_forward.3} parent=11 // pred_region
        _
      $region16: #{cnn_block_forward.3} parent=11 // pred_fallthru
        _
      // Predicated region
      $region17: #{cnn_block_forward.3} parent=11 // pred_check
        %p144 = pneg %p79
      $region18: #{cnn_block_forward.3} parent=11 // pred_check_branch
        %146 = sbr.rel (%p144) target = $region20
      $region19: #{cnn_block_forward.3} parent=11 // pred_region
        _
      $region20: #{cnn_block_forward.3} parent=11 // pred_fallthru
        _
      // Predicated region
      $region21: #{cnn_block_forward.3} parent=11 // pred_check
        %p147 = pneg %p100
      $region22: #{cnn_block_forward.3} parent=11 // pred_check_branch
        %149 = sbr.rel (%p147) target = $region24
      $region23: #{cnn_block_forward.3} parent=11 // pred_region
        _
      $region24: #{cnn_block_forward.3} parent=11 // pred_fallthru
        _
    $region12: #{cnn_block_forward.3} parent=5 // pred_fallthru
      _
    %p150 = scmp.lt.s32.totalorder %s11, 2
    // Predicated region
    $region25: #{cnn_block_forward.3} parent=5 // pred_check
      %p151 = pneg %p150
    $region26: #{cnn_block_forward.3} parent=5 // pred_check_branch
      %153 = sbr.rel (%p151) target = $region28
    $region27: #{cnn_block_forward.3} parent=5 // pred_region
      // Predicated region
      $region29: #{cnn_block_forward.3} parent=27 // pred_check
        %p154 = pneg %p31
      $region30: #{cnn_block_forward.3} parent=27 // pred_check_branch
        %156 = sbr.rel (%p154) target = $region32
      $region31: #{cnn_block_forward.3} parent=27 // pred_region
        %p157 = scmp.lt.s32.totalorder %s11, 1
        %s158 = scalar_select %p157, %s11, 1
        %s159 = smul.addr %s158, 8
        %s160 = scalar_lea.vmem %s0, %s159
      $region32: #{cnn_block_forward.3} parent=27 // pred_fallthru
        _
    $region28: #{cnn_block_forward.3} parent=5 // pred_fallthru
      _
    %p161 = scmp.le.s32.totalorder 1, %s11
    %p162 = scmp.lt.s32.totalorder %s11, 3
    %p163 = pnand %p161, %p162
    %p164 = pneg %p163
    // Predicated region
    $region33: #{cnn_block_forward.3} parent=5 // pred_check
      _
    $region34: #{cnn_block_forward.3} parent=5 // pred_check_branch
      %166 = sbr.rel (%p163) target = $region36
    $region35: #{cnn_block_forward.3} parent=5 // pred_region
      %s167 = ssub.s32 %s11, 1
      %p168 = scmp.lt.s32.totalorder %s16, 1
      %s169 = scalar_select %p168, %s16, 1
      %s170 = smul.addr %s169, 8
      %s171 = scalar_lea.vmem %s0, %s170
      %p172 = pneg %p37
      %p173 = pneg %p34
      %p174 = pneg %p58
      %p175 = pneg %p55
      %p176 = pneg %p79
      %p177 = pneg %p76
      %p178 = pneg %p100
      %p179 = pneg %p97
      %p180 = pneg %p126
      %p181 = pneg %p123
      %p182 = scmp.lt.s32.totalorder %s16, 1
      %s183 = scalar_select %p182, %s16, 1
      %s184 = smul.addr %s183, 8
      %s185 = scalar_lea.vmem %s4, %s184
      %p186 = scmp.lt.s32.totalorder %s16, 1
      %s187 = scalar_select %p186, %s16, 1
      %s188 = smul.addr %s187, 8
      %s189 = scalar_lea.vmem %s0, %s188
      %p190 = scmp.lt.s32.totalorder %s16, 1
      %s191 = scalar_select %p190, %s16, 1
      %s192 = smul.addr %s191, 8
      %s193 = scalar_lea.vmem %s4, %s192
      %v194 = vld [vmem:[%s189] sm:$0xff]
      %v195 = vld [vmem:[%s1] sm:$0xff]
      %197 = vset.pattern.permute.xlu0 0
      %198 = vperm.xlu0 %197, %v195
      %v199 = vpop.permute.xlu0 %198
      %v201 = vmul.f32 %v194, %v199
      %v202 = vld [vmem:[%s2] sm:$0xff]
      %204 = vset.pattern.permute.xlu0 0
      %205 = vperm.xlu0 %204, %v202
      %v206 = vpop.permute.xlu0 %205
      %v208 = vadd.f32 %v201, %v206
      %s209 = sld [smem:[#allocation2]]
      %vm210 = vcmp.ge.f32.partialorder %v208, 0.0
      %v211 = vstv %s209
      %v212 = vmul.f32 %v211, %v208
      %v213 = vsel %vm210, %v208, %v212
      %214 = vst [vmem:[%s193] sm:$0xff] %v213
      %p215 = scmp.lt.s32.totalorder %s16, 1
      %s216 = scalar_select %p215, %s16, 1
      %s217 = smul.addr %s216, 8
      %s218 = scalar_lea.vmem %s4, %s217
      // Predicated region
      $region37: #{cnn_block_forward.3} parent=35 // pred_check
        %p219 = pneg %p123
      $region38: #{cnn_block_forward.3} parent=35 // pred_check_branch
        %221 = sbr.rel (%p219) target = $region40
      $region39: #{cnn_block_forward.3} parent=35 // pred_region
        _
      $region40: #{cnn_block_forward.3} parent=35 // pred_fallthru
        _
    $region36: #{cnn_block_forward.3} parent=5 // pred_fallthru
      _
    %p222 = scmp.le.s32.totalorder 2, %s11
    // Predicated region
    $region41: #{cnn_block_forward.3} parent=5 // pred_check
      %p223 = pneg %p222
    $region42: #{cnn_block_forward.3} parent=5 // pred_check_branch
      %225 = sbr.rel (%p223) target = $region44
    $region43: #{cnn_block_forward.3} parent=5 // pred_region
      %s226 = ssub.s32 %s11, 2
      // Predicated region
      $region45: #{cnn_block_forward.3} parent=43 // pred_check
        %p227 = pneg %p129
      $region46: #{cnn_block_forward.3} parent=43 // pred_check_branch
        %229 = sbr.rel (%p227) target = $region48
      $region47: #{cnn_block_forward.3} parent=43 // pred_region
        %p230 = scmp.lt.s32.totalorder %s17, 1
        %s231 = scalar_select %p230, %s17, 1
        %s232 = smul.addr %s231, 8
        %s233 = scalar_lea.vmem %s4, %s232
      $region48: #{cnn_block_forward.3} parent=43 // pred_fallthru
        _
    $region44: #{cnn_block_forward.3} parent=5 // pred_fallthru
      _
  $region6: #{cnn_block_forward.3} parent=0 // loop_footer
    %s15 = sadd.s32 1, %s11
  $region7: #{cnn_block_forward.3} parent=0 // loop_footer_branch
    %10 = sbr.rel target = $region3
  $region8: #{cnn_block_forward.3} parent=0 // loop_exit
    _

</llo_original>
